<compile_context>
chip_gen: v7x
topology: tpu7x:2x2x1
jax: 0.10.0
libtpu: 0.0.40
codegen_flags: <defaults>
</compile_context>

<pallas_src>
import functools
import math

import jax
import jax.numpy as jnp
from jax.experimental import pallas as pl
from jax.experimental.pallas import tpu as pltpu

# ----------------------------- configuration -------------------------------
B = 2            # batch
S = 8            # sequence length
D_MODEL = 32     # embedding dim
MAX_LEN = 5000   # positional-encoding buffer length (module default)
DROPOUT_P = 0.1  # TODO(synk): nn.Dropout training mode (Bernoulli mask + 1/(1-p) scale) not
                 # implemented; forward uses eval-mode identity semantics.


# ----------------------------- pe buffer (module __init__) ------------------
def make_positional_encoding(d_model, max_len=MAX_LEN):
    """Mirrors the PyTorch buffer: pe[0, :, 0::2] = sin, pe[0, :, 1::2] = cos."""
    assert d_model % 2 == 0, "PositionalEncoding buffer construction assumes even d_model"
    position = jnp.arange(max_len, dtype=jnp.float32)[:, None]                 # (L, 1)
    div_term = jnp.exp(jnp.arange(0, d_model, 2, dtype=jnp.float32)
                       * (-math.log(10000.0) / d_model))                       # (D/2,)
    angles = position * div_term[None, :]                                      # (L, D/2)
    pe = jnp.zeros((1, max_len, d_model), jnp.float32)
    pe = pe.at[0, :, 0::2].set(jnp.sin(angles))
    pe = pe.at[0, :, 1::2].set(jnp.cos(angles))
    return pe                                                                  # (1, L, D)


# ------------------------------- kernel --------------------------------------
def pos_enc_kernel(x_ref, pe_ref, o_ref):
    # x_ref : (B, tS*D)  activation tile — batch on sublanes, seq*dim lane-dense
    # pe_ref: (1, tS*D)  matching pe tile, broadcast over the batch sublanes
    # Dropout is identity (eval mode) -> a single broadcast add on the VPU.
    o_ref[...] = x_ref[...] + pe_ref[...]


# --------------------------- tiling helper ------------------------------------
def _choose_seq_tile(b, s, d, itemsize, target_bytes=2 << 20):
    """Largest seq tile (a divisor of s) whose (b, tS*d) block stays under ~2 MiB.

    2 MiB per activation/output block keeps the double-buffered working set
    (x, pe, out) * 2 buffers comfortably inside v5e's 16 MiB default scoped VMEM
    (and therefore also v6e/v7x's 32 MiB)."""
    max_rows = max(1, target_bytes // (b * d * itemsize))
    ts = min(s, max_rows)
    while s % ts != 0:      # keep tiles exactly aligned to pe rows
        ts -= 1
    return ts


# --------------------------- pallas_call wrapper ------------------------------
@functools.partial(jax.jit, donate_argnums=(0,))
def positional_encoding_forward(x, pe):
    """x: [B, S, D]; pe: [1, MAX_LEN, D] buffer. Returns x + pe[:, :S] (dropout = identity)."""
    b, s, d = x.shape
    max_len = pe.shape[1]

    ts = _choose_seq_tile(b, s, d, x.dtype.itemsize)
    num_tiles = s // ts
    tsd = ts * d
    # Lane constraint: the folded seq*dim tile must be a whole number of 128-lane vregs.
    assert tsd % 128 == 0, f"seq_tile * d_model must be a multiple of 128, got {tsd}"

    # Fold (S, D) onto the lane axis; metadata-only reshapes under jit.
    x_flat = x.reshape(b, s * d)
    # Row-major flatten => pe_flat[0, k*tsd:(k+1)*tsd] == pe[0, k*ts:(k+1)*ts, :].reshape(-1)
    pe_flat = pe.reshape(1, max_len * d)

    out_flat = pl.pallas_call(
        pos_enc_kernel,
        out_shape=jax.ShapeDtypeStruct((b, s * d), x.dtype),
        grid=(num_tiles,),                               # stream sequence tiles (pipelined)
        in_specs=[
            pl.BlockSpec((b, tsd), lambda k: (0, k)),    # whole batch for one seq tile
            pl.BlockSpec((1, tsd), lambda k: (0, k)),    # pe tile: fetched once, shared by all B rows
        ],
        out_specs=pl.BlockSpec((b, tsd), lambda k: (0, k)),
        input_output_aliases={0: 0},                     # in-place add into the donated x buffer
        compiler_params=pltpu.CompilerParams(
            dimension_semantics=("parallel",)),          # seq tiles split across TCs on v7x megacore
    )(x_flat, pe_flat)

    return out_flat.reshape(b, s, d)


# --------------------------------- main --------------------------------------
if __name__ == "__main__":
    key = jax.random.PRNGKey(0)
    x = jax.random.normal(key, (B, S, D_MODEL), jnp.float32)   # [batch, seq_len, embedding_dim]
    pe = make_positional_encoding(D_MODEL, MAX_LEN)            # [1, max_len, d_model]

    # Pure-JAX reference (eval-mode dropout == identity), computed BEFORE the kernel
    # call because x's buffer is donated to the jitted forward.
    ref = x + pe[:, :S, :]

    out = jax.block_until_ready(positional_encoding_forward(x, pe))
    assert out.shape == (B, S, D_MODEL), out.shape

    max_err = float(jnp.max(jnp.abs(out - ref)))
    assert jnp.allclose(out, ref, atol=1e-6, rtol=1e-6), max_err

    print("KERNEL_OK")
</pallas_src>

<mosaic_0001>
module attributes {stable_mosaic.version = 11 : i64} {
  func.func @pos_enc_kernel(%arg0: i32, %arg1: memref<2x256xf32, #tpu.memory_space<vmem>>, %arg2: memref<1x256xf32, #tpu.memory_space<vmem>>, %arg3: memref<2x256xf32, #tpu.memory_space<vmem>>) attributes {dimension_semantics = [#tpu.dimension_semantics<parallel>], iteration_bounds = array<i64: 1>, scalar_prefetch = 0 : i64, scratch_operands = 0 : i64, tpu.core_type = #tpu.core_type<tc>, window_params = [{transform_indices = @transform_0, window_bounds = array<i64: 2, 256>}, {transform_indices = @transform_1, window_bounds = array<i64: 1, 256>}, {transform_indices = @transform_2, window_bounds = array<i64: 2, 256>}]} {
    %c0 = arith.constant 0 : index
    %c0_0 = arith.constant 0 : index
    %0 = vector.load %arg1[%c0, %c0_0] : memref<2x256xf32, #tpu.memory_space<vmem>>, vector<2x256xf32>
    %c0_1 = arith.constant 0 : index
    %c0_2 = arith.constant 0 : index
    %1 = vector.load %arg2[%c0_1, %c0_2] : memref<1x256xf32, #tpu.memory_space<vmem>>, vector<1x256xf32>
    %2 = vector.broadcast %1 : vector<1x256xf32> to vector<2x256xf32>
    %3 = arith.addf %0, %2 : vector<2x256xf32>
    %c0_3 = arith.constant 0 : index
    %c0_4 = arith.constant 0 : index
    %4 = vector.load %arg3[%c0_3, %c0_4] : memref<2x256xf32, #tpu.memory_space<vmem>>, vector<2x256xf32>
    tpu.vector_store %arg3[%c0_3, %c0_4], %3 {strides = array<i32>} : memref<2x256xf32, #tpu.memory_space<vmem>>, vector<2x256xf32>,
    return
  }
  func.func @transform_0(%arg0: i32) -> (i32, i32) {
    %c0_i32 = arith.constant 0 : i32
    %c0_i32_0 = arith.constant 0 : i32
    return %c0_i32, %arg0 : i32, i32
  }
  func.func @transform_1(%arg0: i32) -> (i32, i32) {
    %c0_i32 = arith.constant 0 : i32
    %c0_i32_0 = arith.constant 0 : i32
    return %c0_i32, %arg0 : i32, i32
  }
  func.func @transform_2(%arg0: i32) -> (i32, i32) {
    %c0_i32 = arith.constant 0 : i32
    %c0_i32_0 = arith.constant 0 : i32
    return %c0_i32, %arg0 : i32, i32
  }
}

</mosaic_0001>

<llo_original>
// kernel: positional_encoding_forward.1
$region0: #{positional_encoding_forward.1}
  #allocation0 [shape = 'u32[]', space=smem, size = 0x4, offset = 0x4, fixed_abs, tag = 'smem constant byte address 0x4 - core index']
  #allocation1 [shape = 'u32[144,128]{1,0:T(1,128)}', space=vmem, size = 0x12000, scoped, tag = 'internal scratch']
  %s0 = inlined_call_operand.vmem [shape: f32[2,256], index: 0, kind: input, shape index: {}, may-alias: {0,2}]
  %s1 = inlined_call_operand.vmem [shape: f32[1,160000], index: 1, kind: input, shape index: {}]
  %s2 = inlined_call_operand.vmem [shape: f32[2,256], index: 2, kind: output, shape index: {}, may-alias: {0,2}]
  %s3 = sld [smem:[#allocation0]]
  $region18: #{positional_encoding_forward.1} parent=0
    _
  %s5 = ssub.s32 1, %s3
  %s6 = scalar_select 0, %s5, %s3
  // Predicated region
  $region2: #{positional_encoding_forward.1} parent=0 // pred_check
    _
  $region3: #{positional_encoding_forward.1} parent=0 // pred_check_branch
    %8 = sbr.rel (0) target = $region5
  $region4: #{positional_encoding_forward.1} parent=0 // pred_region
    _
  $region5: #{positional_encoding_forward.1} parent=0 // pred_fallthru
    _
  // Predicated region
  $region6: #{positional_encoding_forward.1} parent=0 // pred_check
    _
  $region7: #{positional_encoding_forward.1} parent=0 // pred_check_branch
    %10 = sbr.rel (0) target = $region9
  $region8: #{positional_encoding_forward.1} parent=0 // pred_region
    _
  $region9: #{positional_encoding_forward.1} parent=0 // pred_fallthru
    _
  %v11 = vld [vmem:[%s0] sm:$0xf]
  %v12 = vld [vmem:[%s1] sm:$0x3]
  %v14 = vlaneseq
  %v15 = vshrl.u32 %v14, 7
  %v16 = vsub.s32 0, %v15
  %v17 = vrot.slane %v12, %v16
  %v18 = vlaneseq
  %v19 = vshrl.u32 %v18, 7
  %v20 = vsub.s32 1, %v19
  %v21 = vrot.slane %v12, %v20
  %v22 = vcombine.low %v17, %v21
  %v24 = vunpack.c.l.s4 1983009808
  %v25 = vunpack.c.0.s8 %v24
  %v26 = vlaneseq
  %v27 = vshrl.u32 %v26, 7
  %v28 = vsub.s32 %v25, %v27
  %v29 = vrot.slane %v22, %v28
  %v31 = vadd.f32 %v11, %v29
  %32 = vst [vmem:[%s2] sm:$0xf] %v31
  // Predicated region
  $region10: #{positional_encoding_forward.1} parent=0 // pred_check
    _
  $region11: #{positional_encoding_forward.1} parent=0 // pred_check_branch
    %34 = sbr.rel (0) target = $region13
  $region12: #{positional_encoding_forward.1} parent=0 // pred_region
    _
  $region13: #{positional_encoding_forward.1} parent=0 // pred_fallthru
    _
  // Predicated region
  $region14: #{positional_encoding_forward.1} parent=0 // pred_check
    _
  $region15: #{positional_encoding_forward.1} parent=0 // pred_check_branch
    %36 = sbr.rel (0) target = $region17
  $region16: #{positional_encoding_forward.1} parent=0 // pred_region
    _
  $region17: #{positional_encoding_forward.1} parent=0 // pred_fallthru
    _

</llo_original>
